<compile_context>
chip_gen: v7x
topology: tpu7x:2x2x1
jax: 0.10.0
libtpu: 0.0.40
codegen_flags: <defaults>
</compile_context>

<pallas_src>
import functools

import jax
import jax.numpy as jnp
import numpy as np
from jax.experimental import pallas as pl
from jax.experimental.pallas import tpu as pltpu

_LANE = 128
# Below this many bytes the pallas_call launch overhead dominates; XLA's fused
# elementwise op is already at the HBM roofline there.
_DEFAULT_MIN_PALLAS_BYTES = 256 * 1024


def _is_static_scalar(v):
    return isinstance(v, (bool, int, float, np.generic)) or (
        isinstance(v, np.ndarray) and v.ndim == 0)


def _sublane_granule(itemsize):
    # Packed sublane granularity: f32 -> 8 rows, bf16 -> 16, int8/fp8 -> 32.
    return max(8, 32 // max(1, int(itemsize)))


@functools.lru_cache(maxsize=1)
def _target_block_bytes():
    """Byte-based, generation-aware block target.

    v5e and older (16 MiB default scoped VMEM, <=0.8 TB/s HBM): 2 MiB blocks.
    v6e / v7x (32 MiB default scoped VMEM, 1.4-3.2 TB/s HBM):   4 MiB blocks.
    Double-buffered in + out (4x block) fits the default scoped-VMEM limit on
    every generation, so no vmem_limit_bytes override is required.
    """
    try:
        kind = jax.devices()[0].device_kind.lower()
    except Exception:
        return 2 << 20
    for tag in ("v2", "v3", "v4", "v5"):
        if tag in kind:
            return 2 << 20
    return 4 << 20


def _make_kernel(static_scalars):
    """o = x * rmsd + mean; native-dtype load, f32 compute, native-dtype store."""
    if static_scalars is not None:
        mean_c, rmsd_c = static_scalars

        def kernel(x_ref, o_ref):
            xf = x_ref[...].astype(jnp.float32)
            o_ref[...] = (xf * rmsd_c + mean_c).astype(o_ref.dtype)

        return kernel

    def kernel(mean_ref, rmsd_ref, x_ref, o_ref):
        xf = x_ref[...].astype(jnp.float32)
        o_ref[...] = (xf * rmsd_ref[0, 0] + mean_ref[0, 0]).astype(o_ref.dtype)

    return kernel


def _affine_xla(x, mean, rmsd, out_dtype):
    xf = x.astype(jnp.float32)
    return (xf * jnp.asarray(rmsd, jnp.float32)
            + jnp.asarray(mean, jnp.float32)).astype(out_dtype)


def _affine_2d(x2d, mean, rmsd, out_dtype, static_scalars):
    """Tiled affine over a 2-D slab; Pallas masks ragged edge blocks."""
    rows, width = x2d.shape
    itemsize = int(jnp.dtype(x2d.dtype).itemsize)
    granule = _sublane_granule(itemsize)
    target_bytes = _target_block_bytes()

    if width % _LANE == 0:
        # Lane-dense column tile: as wide as a `granule`-row slice allows.
        max_w = max(_LANE, (target_bytes // (granule * itemsize)) // _LANE * _LANE)
        block_w = min(width, max_w)
    else:
        # Non-aligned minor dim: full extent (masked stores, no extra passes).
        block_w = width

    row_budget = max(granule,
                     (target_bytes // (block_w * itemsize)) // granule * granule)
    if rows < 2 * granule:
        block_r = rows                       # single full-extent row block
    else:
        # Keep >= ~4 grid steps so the pipeline overlaps input DMA of step i+1
        # with the writeback of step i-1 (no serial load->compute->store).
        cap = max(granule, (rows // 4) // granule * granule)
        block_r = min(row_budget, cap)

    grid = (pl.cdiv(rows, block_r), pl.cdiv(width, block_w))
    x_spec = pl.BlockSpec((block_r, block_w), lambda i, j: (i, j))
    o_spec = pl.BlockSpec((block_r, block_w), lambda i, j: (i, j))

    if static_scalars is not None:
        in_specs = [x_spec]
        args = (x2d,)
    else:
        smem = pl.BlockSpec(memory_space=pltpu.MemorySpace.SMEM)
        in_specs = [smem, smem, x_spec]
        args = (jnp.asarray(mean, jnp.float32).reshape(1, 1),
                jnp.asarray(rmsd, jnp.float32).reshape(1, 1),
                x2d)

    return pl.pallas_call(
        _make_kernel(static_scalars),
        out_shape=jax.ShapeDtypeStruct((rows, width), out_dtype),
        grid_spec=pl.GridSpec(grid=grid, in_specs=in_specs, out_specs=o_spec),
        compiler_params=pltpu.CompilerParams(
            # "parallel" lets v7x's two TensorCores split the grid; harmless
            # (single TC) on v5e / v6e.
            dimension_semantics=("parallel", "parallel"),
        ),
    )(*args)


def _affine_flat_ragged(x, mean, rmsd, out_dtype, static_scalars):
    """1-D input whose length is not a multiple of 128: Pallas on the
    lane-aligned bulk, plain XLA on the (<1024-element) tail.  Replaces the
    old pad -> kernel -> slice path and its extra full-size HBM passes."""
    n = x.shape[0]
    w = 1024 if n >= 1024 else _LANE
    bulk = (n // w) * w
    if bulk == 0:
        return _affine_xla(x, mean, rmsd, out_dtype)
    head = _affine_2d(x[:bulk].reshape(bulk // w, w), mean, rmsd,
                      out_dtype, static_scalars)
    tail = _affine_xla(x[bulk:], mean, rmsd, out_dtype)
    return jnp.concatenate([head.reshape(bulk), tail], axis=0)


def _affine_pallas(x, mean, rmsd, out_dtype, static_scalars):
    shape = x.shape
    ndim = x.ndim
    if ndim == 0:
        return _affine_xla(x, mean, rmsd, out_dtype)

    itemsize = int(jnp.dtype(x.dtype).itemsize)
    granule = _sublane_granule(itemsize)

    if ndim == 1:
        n = shape[0]
        if n % _LANE != 0:
            return _affine_flat_ragged(x, mean, rmsd, out_dtype, static_scalars)
        width = _LANE
        for w in (1024, 512, 256, _LANE):
            if n % w == 0:
                width = w
                break
        rows = n // width
    else:
        # Collapse ONLY leading dims: shortest trailing suffix whose product is
        # a multiple of 128 -> lane-dense, unmasked stores; keeping the minor
        # dim (last dim % 128 == 0) lets the reshape lower to a bitcast instead
        # of a relayout copy.
        split, width = None, 1
        for i in range(ndim - 1, 0, -1):
            width *= shape[i]
            if width % _LANE == 0:
                split = i
                break
        if split is None:
            # No lane-aligned trailing suffix: keep the original minor dim and
            # use full-extent last-dim blocks (masked stores, zero pad passes).
            split, width = ndim - 1, shape[-1]
        rows = int(np.prod(shape[:split], dtype=np.int64))

    # Pathological: a non-aligned minor dim too wide to tile -> plain XLA.
    if width % _LANE != 0 and width * granule * itemsize > (8 << 20):
        return _affine_xla(x, mean, rmsd, out_dtype)

    out2d = _affine_2d(x.reshape(rows, width), mean, rmsd, out_dtype,
                       static_scalars)
    return out2d.reshape(shape)


def normalizer_denorm(normed_tensor, mean, rmsd, *,
                      min_pallas_bytes=_DEFAULT_MIN_PALLAS_BYTES):
    """Pallas equivalent of Normalizer.forward / denorm: x * rmsd + mean."""
    x = jnp.asarray(normed_tensor)
    if jnp.issubdtype(x.dtype, jnp.floating):
        out_dtype = x.dtype
    else:
        out_dtype = jnp.float32   # match torch promotion for non-float inputs

    if getattr(mean, "size", 1) != 1 or getattr(rmsd, "size", 1) != 1:
        # TODO(synk): per-feature (non-scalar) mean/rmsd buffers broadcast in XLA.
        return _affine_xla(x, mean, rmsd, out_dtype)

    if x.size == 0:
        return x.astype(out_dtype)
    if x.size * jnp.dtype(x.dtype).itemsize < min_pallas_bytes:
        return _affine_xla(x, mean, rmsd, out_dtype)

    static_scalars = None
    if _is_static_scalar(mean) and _is_static_scalar(rmsd):
        # Static module buffers: bake into the kernel as compile-time constants
        # (drops the per-call HBM->SMEM scalar transfers).
        static_scalars = (float(mean), float(rmsd))

    return _affine_pallas(x, mean, rmsd, out_dtype, static_scalars)


class NormalizerPallas:
    """Mirror of the PyTorch Normalizer module (scalar buffers: mean, rmsd)."""

    def __init__(self, mean=0.0, rmsd=1.0,
                 min_pallas_bytes=_DEFAULT_MIN_PALLAS_BYTES):
        # Python floats stay floats so they can be baked into the kernel;
        # array buffers are kept as-is and travel through SMEM.
        self.mean = mean
        self.rmsd = rmsd
        self.min_pallas_bytes = min_pallas_bytes

    def _norm_params(self):
        mean, rmsd = self.mean, self.rmsd
        if _is_static_scalar(mean) and _is_static_scalar(rmsd):
            scale = 1.0 / float(rmsd)          # rmsd must be nonzero (RMSD semantics)
            return -float(mean) * scale, scale
        rmsd = jnp.asarray(rmsd, jnp.float32)
        scale = 1.0 / rmsd
        return -jnp.asarray(mean, jnp.float32) * scale, scale

    def norm(self, tensor):
        # (x - mean) / rmsd expressed through the same affine kernel with
        # scale = 1/rmsd, offset = -mean/rmsd (equal up to last-ulp rounding).
        offset, scale = self._norm_params()
        return normalizer_denorm(tensor, offset, scale,
                                 min_pallas_bytes=self.min_pallas_bytes)

    def denorm(self, normed_tensor):
        return normalizer_denorm(normed_tensor, self.mean, self.rmsd,
                                 min_pallas_bytes=self.min_pallas_bytes)

    def __call__(self, normed_tensor):
        return self.denorm(normed_tensor)

    # TODO(synk): register_buffer / load_state_dict ('std' -> 'rmsd' rename) is
    # framework plumbing with no Pallas equivalent; buffers are plain attributes.


if __name__ == "__main__":
    key = jax.random.PRNGKey(0)
    keys = jax.random.split(key, 6)

    mean, rmsd = 1.5, 2.25
    mean32, rmsd32 = jnp.float32(mean), jnp.float32(rmsd)

    # Force the Pallas path even for the tiny demo tensors.
    module = NormalizerPallas(mean=mean, rmsd=rmsd, min_pallas_bytes=0)

    def ref(x):
        od = x.dtype if jnp.issubdtype(x.dtype, jnp.floating) else jnp.float32
        return (x.astype(jnp.float32) * rmsd32 + mean32).astype(od)

    # 1) Small NCHW-like tensor: lane-aligned trailing suffix (16*16=256).
    x_small = jax.random.normal(keys[0], (2, 4, 16, 16), dtype=jnp.float32)
    out = jax.block_until_ready(module(x_small))
    assert out.shape == x_small.shape and out.dtype == x_small.dtype
    assert jnp.allclose(out, ref(x_small), rtol=1e-6, atol=1e-6)

    # 2) Larger tensor: minor dim 512 kept intact, several pipelined grid steps.
    x_big = jax.random.normal(keys[1], (2, 8, 128, 512), dtype=jnp.float32)
    out_big = jax.block_until_ready(module(x_big))
    assert jnp.allclose(out_big, ref(x_big), rtol=1e-6, atol=1e-6)

    # 3) Ragged final row block (rows % block_r != 0 -> masked edge writes).
    x_rr = jax.random.normal(keys[2], (2, 301, 128), dtype=jnp.float32)
    out_rr = jax.block_until_ready(module(x_rr))
    assert jnp.allclose(out_rr, ref(x_rr), rtol=1e-6, atol=1e-6)

    # 4) Non-lane-aligned minor dim (48): full-extent last-dim blocks.
    x_nw = jax.random.normal(keys[3], (1000, 48), dtype=jnp.float32)
    out_nw = jax.block_until_ready(module(x_nw))
    assert jnp.allclose(out_nw, ref(x_nw), rtol=1e-6, atol=1e-6)

    # 5) Ragged 1-D length: Pallas bulk + XLA tail (no pad/slice HBM passes).
    x_1d = jax.random.normal(keys[4], (10247,), dtype=jnp.float32)
    out_1d = jax.block_until_ready(module(x_1d))
    assert out_1d.shape == x_1d.shape
    assert jnp.allclose(out_1d, ref(x_1d), rtol=1e-6, atol=1e-6)

    # 6) bf16 input: native-dtype load/store, f32 compute, 16-row granule.
    x_bf = jax.random.normal(keys[5], (4, 128, 256), dtype=jnp.bfloat16)
    out_bf = jax.block_until_ready(module(x_bf))
    assert out_bf.dtype == jnp.bfloat16
    assert jnp.allclose(out_bf.astype(jnp.float32),
                        ref(x_bf).astype(jnp.float32), rtol=2e-2, atol=2e-2)

    # 7) Traced (array) mean/rmsd: SMEM scalar path of the same kernel.
    out_dyn = jax.block_until_ready(
        normalizer_denorm(x_small, jnp.float32(mean), jnp.float32(rmsd),
                          min_pallas_bytes=0))
    assert jnp.allclose(out_dyn, ref(x_small), rtol=1e-6, atol=1e-6)

    # 8) norm/denorm round trip through the same kernel.
    back = jax.block_until_ready(module.norm(out_big))
    assert jnp.allclose(back, x_big, rtol=1e-5, atol=1e-5)

    print("KERNEL_OK")
</pallas_src>

<mosaic_0001>
module attributes {stable_mosaic.version = 11 : i64} {
  func.func @kernel(%arg0: i32, %arg1: i32, %arg2: memref<8x256xf32, #tpu.memory_space<vmem>>, %arg3: memref<8x256xf32, #tpu.memory_space<vmem>>) attributes {dimension_semantics = [#tpu.dimension_semantics<parallel>, #tpu.dimension_semantics<parallel>], iteration_bounds = array<i64: 1, 1>, scalar_prefetch = 0 : i64, scratch_operands = 0 : i64, tpu.core_type = #tpu.core_type<tc>, window_params = [{transform_indices = @transform_0, window_bounds = array<i64: 8, 256>}, {transform_indices = @transform_1, window_bounds = array<i64: 8, 256>}]} {
    %c0 = arith.constant 0 : index
    %c0_0 = arith.constant 0 : index
    %0 = vector.load %arg2[%c0, %c0_0] : memref<8x256xf32, #tpu.memory_space<vmem>>, vector<8x256xf32>
    %cst = arith.constant 2.250000e+00 : f32
    %1 = vector.broadcast %cst : f32 to vector<8x256xf32>
    %2 = arith.mulf %0, %1 : vector<8x256xf32>
    %cst_1 = arith.constant 1.500000e+00 : f32
    %3 = vector.broadcast %cst_1 : f32 to vector<8x256xf32>
    %4 = arith.addf %2, %3 : vector<8x256xf32>
    %c0_2 = arith.constant 0 : index
    %c0_3 = arith.constant 0 : index
    %5 = vector.load %arg3[%c0_2, %c0_3] : memref<8x256xf32, #tpu.memory_space<vmem>>, vector<8x256xf32>
    tpu.vector_store %arg3[%c0_2, %c0_3], %4 {strides = array<i32>} : memref<8x256xf32, #tpu.memory_space<vmem>>, vector<8x256xf32>,
    return
  }
  func.func @transform_0(%arg0: i32, %arg1: i32) -> (i32, i32) {
    %c0_i32 = arith.constant 0 : i32
    return %arg0, %arg1 : i32, i32
  }
  func.func @transform_1(%arg0: i32, %arg1: i32) -> (i32, i32) {
    %c0_i32 = arith.constant 0 : i32
    return %arg0, %arg1 : i32, i32
  }
}

</mosaic_0001>

<llo_original>
// kernel: tpu_custom_call.1
$region0: #{tpu_custom_call.1}
  #allocation0 [shape = 'u32[]', space=smem, size = 0x4, offset = 0x4, fixed_abs, tag = 'smem constant byte address 0x4 - core index']
  #allocation1 [shape = 'u32[144,128]{1,0:T(1,128)}', space=vmem, size = 0x12000, scoped, tag = 'internal scratch']
  %s0 = inlined_call_operand.hbm [shape: f32[8,256], index: 0, kind: input, shape index: {}]
  %s1 = inlined_call_operand.hbm [shape: f32[8,256], index: 1, kind: output, shape index: {}]
  %s2 = sld [smem:[#allocation0]]
  $region18: #{tpu_custom_call.1} parent=0
    _
  %s4 = ssub.s32 1, %s2
  %s5 = scalar_select 0, %s4, %s2
  $region1: #{tpu_custom_call.1} parent=0
    #allocation2 [shape = 'u8[8192]{0}', space=vmem, size = 0x2000, scoped, tag = 'input window, operand 0, single buffered']
    #allocation3 [shape = 's32[1]{0}', space=sflag, size = 0x4, scoped, tag = 'scoped memory for tpu_custom_call.1']
    #allocation4 [shape = 's32[1]{0}', space=sflag, size = 0x4, scoped, tag = 'scoped memory for tpu_custom_call.1']
    #allocation5 [shape = 'u8[8192]{0}', space=vmem, size = 0x2000, scoped, tag = 'output window, operand 0, single buffered']
    %6 = vsyncpa [#allocation3], 0
    %7 = vsyncpa [#allocation4], 0
    // Predicated region
    $region2: #{tpu_custom_call.1} parent=1 // pred_check
      _
    $region3: #{tpu_custom_call.1} parent=1 // pred_check_branch
      %9 = sbr.rel (0) target = $region5
    $region4: #{tpu_custom_call.1} parent=1 // pred_region
      %s11 = ssub.s32 256, 256
      %12 = vsyncadd [#allocation3], %s11
      %s14 = sshll.u32 [#allocation2], 4
      %s15 = int_to_ptr.vmem [resolvable:$true] %s14
      %17 = dma.hbm_to_vmem [thread:$0]  %s0, 256, %s15, [#allocation3]
    $region5: #{tpu_custom_call.1} parent=1 // pred_fallthru
      _
    // Predicated region
    $region6: #{tpu_custom_call.1} parent=1 // pred_check
      _
    $region7: #{tpu_custom_call.1} parent=1 // pred_check_branch
      %19 = sbr.rel (0) target = $region9
    $region8: #{tpu_custom_call.1} parent=1 // pred_region
      %20 = dma.done [#allocation3], 256
    $region9: #{tpu_custom_call.1} parent=1 // pred_fallthru
      _
    %v21 = vld [vmem:[#allocation2] sm:$0xff]
    %v22 = vld [vmem:[#allocation2 + $0x8] sm:$0xff]
    %v23 = vmul.f32 %v21, 2.25
    %v24 = vmul.f32 %v22, 2.25
    %v25 = vadd.f32 %v23, 1.5
    %v26 = vadd.f32 %v24, 1.5
    %27 = vst [vmem:[#allocation5] sm:$0xff] %v25
    %28 = vst [vmem:[#allocation5 + $0x8] sm:$0xff] %v26
    // Predicated region
    $region10: #{tpu_custom_call.1} parent=1 // pred_check
      _
    $region11: #{tpu_custom_call.1} parent=1 // pred_check_branch
      %30 = sbr.rel (0) target = $region13
    $region12: #{tpu_custom_call.1} parent=1 // pred_region
      %s32 = ssub.s32 256, 256
      %33 = vsyncadd [#allocation4], %s32
      %s35 = sshll.u32 [#allocation5], 4
      %s36 = int_to_ptr.vmem [resolvable:$true] %s35
      %38 = dma.vmem_to_hbm [thread:$0]  %s36, 256, %s1, [#allocation4]
    $region13: #{tpu_custom_call.1} parent=1 // pred_fallthru
      _
    // Predicated region
    $region14: #{tpu_custom_call.1} parent=1 // pred_check
      _
    $region15: #{tpu_custom_call.1} parent=1 // pred_check_branch
      %40 = sbr.rel (0) target = $region17
    $region16: #{tpu_custom_call.1} parent=1 // pred_region
      %41 = dma.done [#allocation4], 256
    $region17: #{tpu_custom_call.1} parent=1 // pred_fallthru
      _
    %42 = vsyncpa [#allocation3], 1
    %43 = vsyncpa [#allocation4], 1

</llo_original>
